<compile_context>
chip_gen: v7x
topology: tpu7x:2x2x1
jax: 0.10.0
libtpu: 0.0.40
codegen_flags: <defaults>
</compile_context>

<pallas_src>
import functools

import numpy as np

import jax
import jax.numpy as jnp
from jax.experimental import pallas as pl
from jax.experimental.pallas import tpu as pltpu


def _round_up(x, m):
    return ((x + m - 1) // m) * m


def _pick_tile(n_pad, cap, keep_two_blocks=False):
    """Largest power-of-two multiple of 128 dividing n_pad, capped at `cap`."""
    t = 128
    while t * 2 <= min(cap, n_pad) and n_pad % (t * 2) == 0:
        t *= 2
    if keep_two_blocks and t == n_pad and n_pad > 128:
        t //= 2  # keep >=2 row tiles so a 2-TC chip (v7x) is not half idle
    return t


def _nonzero_block_table(dst_np, src_np, n_pad, tm, tk):
    """Per row-tile list of adjacency column blocks containing >=1 edge.

    Padded with a repeat of the last valid block index (no extra DMA for the
    tail; the kernel pl.when-skips the accumulate past `cnt`).
    """
    nb_i, nb_k = n_pad // tm, n_pad // tk
    nz = np.zeros((nb_i, nb_k), dtype=bool)
    if dst_np.size:
        nz[dst_np // tm, src_np // tk] = True
    cnt = nz.sum(axis=1).astype(np.int32)
    max_nnz = max(int(cnt.max()), 1)
    tbl = np.zeros((nb_i, max_nnz), dtype=np.int32)
    for i in range(nb_i):
        cols = np.nonzero(nz[i])[0]
        if cols.size:
            tbl[i, : cols.size] = cols
            tbl[i, cols.size:] = cols[-1]
    return tbl, cnt


def _sage_layer_kernel(tbl_ref, cnt_ref, a_ref, x_agg_ref, x_root_ref,
                       inv_deg_ref, wr_ref, wn_ref, b_ref, out_ref, acc_ref,
                       *, activation, valid_cols):
    """One GraphSAGE layer at grid point (row-tile i, nonzero A-block slot k)."""
    i = pl.program_id(0)
    k = pl.program_id(1)

    @pl.when(k == 0)
    def _():
        acc_ref[...] = jnp.zeros_like(acc_ref)

    # Accumulate only over this row tile's real (nonzero) adjacency blocks.
    # A is int8 edge counts -> bf16 for the MXU; accumulation in f32.
    @pl.when(k < cnt_ref[i])
    def _():
        acc_ref[...] += jnp.dot(
            a_ref[...].astype(jnp.bfloat16), x_agg_ref[...],
            preferred_element_type=jnp.float32)

    @pl.when(k == pl.num_programs(1) - 1)
    def _():
        # Exact mean: f32 1/deg applied once at finalize; bf16 MXU operands.
        agg = (acc_ref[...] * inv_deg_ref[...]).astype(jnp.bfloat16)
        z = (jnp.dot(x_root_ref[...], wr_ref[...],
                     preferred_element_type=jnp.float32)
             + jnp.dot(agg, wn_ref[...], preferred_element_type=jnp.float32)
             + b_ref[...])
        if activation == "relu":
            out_ref[...] = jnp.maximum(z, 0.0).astype(out_ref.dtype)
        else:  # masked log_softmax over the first `valid_cols` lanes
            col = jax.lax.broadcasted_iota(jnp.int32, z.shape, 1)
            valid = col < valid_cols
            zm = jnp.where(valid, z, -jnp.inf)
            m = jnp.max(zm, axis=1, keepdims=True)
            shifted = zm - m
            lse = jnp.log(jnp.sum(jnp.exp(shifted), axis=1, keepdims=True))
            out_ref[...] = jnp.where(valid, shifted - lse, 0.0).astype(out_ref.dtype)


def _sage_layer(tbl, cnt, a_i8, x, inv_deg, w_root, w_neigh, b, *,
                tm, tk, f_pad, o_pad, out_dtype, activation, valid_cols):
    n_pad = a_i8.shape[0]
    grid = (n_pad // tm, tbl.shape[1])
    kernel = functools.partial(_sage_layer_kernel, activation=activation,
                               valid_cols=valid_cols)
    return pl.pallas_call(
        kernel,
        out_shape=jax.ShapeDtypeStruct((n_pad, o_pad), out_dtype),
        grid_spec=pltpu.PrefetchScalarGridSpec(
            num_scalar_prefetch=2,
            grid=grid,
            in_specs=[
                # A edge-count tile (int8), column block picked from the table
                pl.BlockSpec((tm, tk), lambda i, k, tbl, cnt: (i, tbl[i, k])),
                # x rows being aggregated (bf16), same block index as A's column
                pl.BlockSpec((tk, f_pad), lambda i, k, tbl, cnt: (tbl[i, k], 0)),
                # x rows of this output tile (bf16)
                pl.BlockSpec((tm, f_pad), lambda i, k, tbl, cnt: (i, 0)),
                # exact f32 1/deg for this row tile
                pl.BlockSpec((tm, 1), lambda i, k, tbl, cnt: (i, 0)),
                # W_root, W_neigh (bf16), bias (f32)
                pl.BlockSpec((f_pad, o_pad), lambda i, k, tbl, cnt: (0, 0)),
                pl.BlockSpec((f_pad, o_pad), lambda i, k, tbl, cnt: (0, 0)),
                pl.BlockSpec((1, o_pad), lambda i, k, tbl, cnt: (0, 0)),
            ],
            out_specs=pl.BlockSpec((tm, o_pad), lambda i, k, tbl, cnt: (i, 0)),
            scratch_shapes=[pltpu.VMEM((tm, f_pad), jnp.float32)],
        ),
        compiler_params=pltpu.CompilerParams(
            dimension_semantics=("parallel", "arbitrary"),
            vmem_limit_bytes=48 * 1024 * 1024,  # within v7x's 64 MiB physical VMEM
        ),
    )(tbl, cnt, a_i8, x, x, inv_deg, w_root, w_neigh, b)


def _pad_weight_bf16(w, f_pad, o_pad):
    f, o = w.shape
    return (jnp.zeros((f_pad, o_pad), jnp.float32)
            .at[:f, :o].set(w).astype(jnp.bfloat16))


def _pad_bias(b, o_pad):
    b = b.reshape(1, -1)
    return jnp.zeros((1, o_pad), jnp.float32).at[:, :b.shape[1]].set(b)


def fake_news_gnn_forward(x, edge_index, params):
    """x: [N, input_dim] f32; edge_index: [2, E] int32 (row0=src, row1=dst).

    Eager-only wrapper: the nonzero-block table (scalar prefetch) is built on
    host so the Pallas grid stays static.
    """
    n, input_dim = x.shape
    hidden_dim = params["w1r"].shape[1]
    output_dim = params["w2r"].shape[1]

    src, dst = edge_index[0], edge_index[1]

    # Lane-dense padding (nodes and every feature dim to multiples of 128).
    n_pad = _round_up(max(n, 128), 128)
    f_in = _round_up(input_dim, 128)
    f_h = _round_up(hidden_dim, 128)
    f_o = _round_up(output_dim, 128)

    # Asymmetric tiles: tm for output rows (>=2 blocks when possible for v7x's
    # two TensorCores), tk for the adjacency reduction axis.
    tm = _pick_tile(n_pad, 1024, keep_two_blocks=True)
    tk = _pick_tile(n_pad, 2048)

    # Single-pass padded adjacency: raw edge counts in int8 (exact small ints,
    # 4x fewer HBM bytes than f32; duplicate edges keep their multiplicity so
    # the mean matches PyG SAGEConv over the edge list).
    ones_e = jnp.ones(src.shape, jnp.int8)
    a_i8 = jnp.zeros((n_pad, n_pad), jnp.int8).at[dst, src].add(ones_e)

    # Exact f32 1/deg per destination node, O(E) from the edge list
    # (isolated nodes -> zero aggregation, matching PyG).
    deg = jnp.zeros((n,), jnp.float32).at[dst].add(1.0)
    inv_deg = (jnp.zeros((n_pad, 1), jnp.float32)
               .at[:n, 0].set(1.0 / jnp.maximum(deg, 1.0)))

    # bf16 node features; f32 accumulation happens inside the kernel.
    x_pad = (jnp.zeros((n_pad, f_in), jnp.bfloat16)
             .at[:n, :input_dim].set(x.astype(jnp.bfloat16)))

    w1r = _pad_weight_bf16(params["w1r"], f_in, f_h)
    w1n = _pad_weight_bf16(params["w1n"], f_in, f_h)
    b1 = _pad_bias(params["b1"], f_h)
    w2r = _pad_weight_bf16(params["w2r"], f_h, f_o)
    w2n = _pad_weight_bf16(params["w2n"], f_h, f_o)
    b2 = _pad_bias(params["b2"], f_o)

    # Host-side block-sparsity table: zero A blocks are neither DMA'd nor
    # multiplied in either layer.
    tbl_np, cnt_np = _nonzero_block_table(
        np.asarray(jax.device_get(dst)), np.asarray(jax.device_get(src)),
        n_pad, tm, tk)
    tbl = jnp.asarray(tbl_np)
    cnt = jnp.asarray(cnt_np)

    # Phase 1: h = relu(SAGE1(x, A)) emitted in bf16 (halves writeback and
    # layer-2 streaming).  Phase 2: log_softmax(SAGE2(h, A)) in f32.
    h = _sage_layer(tbl, cnt, a_i8, x_pad, inv_deg, w1r, w1n, b1,
                    tm=tm, tk=tk, f_pad=f_in, o_pad=f_h,
                    out_dtype=jnp.bfloat16, activation="relu",
                    valid_cols=hidden_dim)
    out = _sage_layer(tbl, cnt, a_i8, h, inv_deg, w2r, w2n, b2,
                      tm=tm, tk=tk, f_pad=f_h, o_pad=f_o,
                      out_dtype=jnp.float32, activation="log_softmax",
                      valid_cols=output_dim)
    return out[:n, :output_dim]


def reference_forward(x, edge_index, params):
    """Pure-JAX f32 reference with identical semantics."""
    n = x.shape[0]
    src, dst = edge_index[0], edge_index[1]
    adj = jnp.zeros((n, n), jnp.float32).at[dst, src].add(1.0)
    deg = jnp.sum(adj, axis=1, keepdims=True)
    a = adj / jnp.maximum(deg, 1.0)
    h = jnp.maximum(x @ params["w1r"] + (a @ x) @ params["w1n"] + params["b1"], 0.0)
    z = h @ params["w2r"] + (a @ h) @ params["w2n"] + params["b2"]
    return jax.nn.log_softmax(z, axis=1)


def init_params(key, input_dim, hidden_dim, output_dim):
    ks = jax.random.split(key, 4)
    scale1 = 1.0 / jnp.sqrt(jnp.float32(input_dim))
    scale2 = 1.0 / jnp.sqrt(jnp.float32(hidden_dim))
    return {
        "w1r": jax.random.normal(ks[0], (input_dim, hidden_dim), jnp.float32) * scale1,
        "w1n": jax.random.normal(ks[1], (input_dim, hidden_dim), jnp.float32) * scale1,
        "b1": jnp.zeros((1, hidden_dim), jnp.float32),
        "w2r": jax.random.normal(ks[2], (hidden_dim, output_dim), jnp.float32) * scale2,
        "w2n": jax.random.normal(ks[3], (hidden_dim, output_dim), jnp.float32) * scale2,
        "b2": jnp.zeros((1, output_dim), jnp.float32),
    }


def _run_case(key, num_nodes, num_edges, input_dim, hidden_dim, output_dim):
    k_x, k_src, k_dst, k_p = jax.random.split(key, 4)
    x = jax.random.normal(k_x, (num_nodes, input_dim), jnp.float32)
    edge_index = jnp.stack([
        jax.random.randint(k_src, (num_edges,), 0, num_nodes, jnp.int32),
        jax.random.randint(k_dst, (num_edges,), 0, num_nodes, jnp.int32),
    ], axis=0)
    params = init_params(k_p, input_dim, hidden_dim, output_dim)

    out = fake_news_gnn_forward(x, edge_index, params)
    jax.block_until_ready(out)
    ref = reference_forward(x, edge_index, params)

    assert out.shape == (num_nodes, output_dim)
    # log_softmax rows must sum (in prob space) to 1
    assert bool(jnp.allclose(jnp.sum(jnp.exp(out), axis=1), 1.0, atol=1e-3))
    # match the f32 reference (bf16 features/weights -> small bounded error)
    assert bool(jnp.allclose(out, ref, atol=0.1, rtol=0.1)), \
        float(jnp.max(jnp.abs(out - ref)))


if __name__ == "__main__":
    key = jax.random.PRNGKey(0)
    k0, k1 = jax.random.split(key)

    # Small case matching the module's intended scale.
    _run_case(k0, num_nodes=16, num_edges=40,
              input_dim=8, hidden_dim=32, output_dim=4)
    # Multi-tile case exercising the block-sparse table across several blocks.
    _run_case(k1, num_nodes=300, num_edges=900,
              input_dim=8, hidden_dim=32, output_dim=4)

    print("KERNEL_OK")
</pallas_src>

<mosaic_0001>
module attributes {stable_mosaic.version = 11 : i64} {
  func.func @_sage_layer_kernel(%arg0: i32, %arg1: i32, %arg2: memref<1x1xi32, #tpu.memory_space<smem>>, %arg3: memref<1xi32, #tpu.memory_space<smem>>, %arg4: memref<128x128xi8, #tpu.memory_space<vmem>>, %arg5: memref<128x128xbf16, #tpu.memory_space<vmem>>, %arg6: memref<128x128xbf16, #tpu.memory_space<vmem>>, %arg7: memref<128x1xf32, #tpu.memory_space<vmem>>, %arg8: memref<128x128xbf16, #tpu.memory_space<vmem>>, %arg9: memref<128x128xbf16, #tpu.memory_space<vmem>>, %arg10: memref<1x128xf32, #tpu.memory_space<vmem>>, %arg11: memref<128x128xbf16, #tpu.memory_space<vmem>>, %arg12: memref<128x128xf32, #tpu.memory_space<vmem>>) attributes {dimension_semantics = [#tpu.dimension_semantics<parallel>, #tpu.dimension_semantics<arbitrary>], iteration_bounds = array<i64: 1, 1>, scalar_prefetch = 2 : i64, scratch_operands = 1 : i64, tpu.core_type = #tpu.core_type<tc>, window_params = [{transform_indices = @transform_0, window_bounds = array<i64: 128, 128>}, {transform_indices = @transform_1, window_bounds = array<i64: 128, 128>}, {transform_indices = @transform_2, window_bounds = array<i64: 128, 128>}, {transform_indices = @transform_3, window_bounds = array<i64: 128, 1>}, {pipeline_mode = #tpu.pipeline_mode<synchronous>, transform_indices = @transform_4, window_bounds = array<i64: 128, 128>}, {pipeline_mode = #tpu.pipeline_mode<synchronous>, transform_indices = @transform_5, window_bounds = array<i64: 128, 128>}, {pipeline_mode = #tpu.pipeline_mode<synchronous>, transform_indices = @transform_6, window_bounds = array<i64: 1, 128>}, {transform_indices = @transform_7, window_bounds = array<i64: 128, 128>}]} {
    %c0_i32 = arith.constant 0 : i32
    %0 = arith.cmpi eq, %arg1, %c0_i32 : i32
    %1 = arith.extui %0 : i1 to i32
    %c0_i32_0 = arith.constant 0 : i32
    %2 = arith.cmpi ne, %1, %c0_i32_0 : i32
    scf.if %2 {
      %cst = arith.constant 0.000000e+00 : f32
      %11 = vector.broadcast %cst : f32 to vector<128x128xf32>
      %c0 = arith.constant 0 : index
      %c0_4 = arith.constant 0 : index
      %12 = vector.load %arg12[%c0, %c0_4] : memref<128x128xf32, #tpu.memory_space<vmem>>, vector<128x128xf32>
      tpu.vector_store %arg12[%c0, %c0_4], %11 {strides = array<i32>} : memref<128x128xf32, #tpu.memory_space<vmem>>, vector<128x128xf32>,
    } else {
    }
    %3 = arith.index_cast %arg0 : i32 to index
    %4 = memref.load %arg3[%3] : memref<1xi32, #tpu.memory_space<smem>>
    %5 = arith.cmpi slt, %arg1, %4 : i32
    %6 = arith.extui %5 : i1 to i32
    %c0_i32_1 = arith.constant 0 : i32
    %7 = arith.cmpi ne, %6, %c0_i32_1 : i32
    scf.if %7 {
      %c0 = arith.constant 0 : index
      %c0_4 = arith.constant 0 : index
      %11 = vector.load %arg12[%c0, %c0_4] : memref<128x128xf32, #tpu.memory_space<vmem>>, vector<128x128xf32>
      %c0_5 = arith.constant 0 : index
      %c0_6 = arith.constant 0 : index
      %12 = vector.load %arg4[%c0_5, %c0_6] : memref<128x128xi8, #tpu.memory_space<vmem>>, vector<128x128xi8>
      %13 = arith.sitofp %12 : vector<128x128xi8> to vector<128x128xbf16>
      %c0_7 = arith.constant 0 : index
      %c0_8 = arith.constant 0 : index
      %14 = vector.load %arg5[%c0_7, %c0_8] : memref<128x128xbf16, #tpu.memory_space<vmem>>, vector<128x128xbf16>
      %cst = arith.constant dense<0.000000e+00> : vector<128x128xf32>
      %15 = tpu.matmul %13, %14, %cst {dimension_numbers = #tpu.dot_dimension_numbers<[1], [0], [0], [1], [0, 0, 1, 1], [], []>} : vector<128x128xbf16>, vector<128x128xbf16>, vector<128x128xf32> -> vector<128x128xf32>
      %16 = arith.addf %11, %15 : vector<128x128xf32>
      %c0_9 = arith.constant 0 : index
      %c0_10 = arith.constant 0 : index
      %17 = vector.load %arg12[%c0_9, %c0_10] : memref<128x128xf32, #tpu.memory_space<vmem>>, vector<128x128xf32>
      tpu.vector_store %arg12[%c0_9, %c0_10], %16 {strides = array<i32>} : memref<128x128xf32, #tpu.memory_space<vmem>>, vector<128x128xf32>,
    } else {
    }
    %c0_i32_2 = arith.constant 0 : i32
    %8 = arith.cmpi eq, %arg1, %c0_i32_2 : i32
    %9 = arith.extui %8 : i1 to i32
    %c0_i32_3 = arith.constant 0 : i32
    %10 = arith.cmpi ne, %9, %c0_i32_3 : i32
    scf.if %10 {
      %c0 = arith.constant 0 : index
      %c0_4 = arith.constant 0 : index
      %11 = vector.load %arg12[%c0, %c0_4] : memref<128x128xf32, #tpu.memory_space<vmem>>, vector<128x128xf32>
      %c0_5 = arith.constant 0 : index
      %c0_6 = arith.constant 0 : index
      %12 = vector.load %arg7[%c0_5, %c0_6] : memref<128x1xf32, #tpu.memory_space<vmem>>, vector<128x1xf32>
      %13 = vector.broadcast %12 : vector<128x1xf32> to vector<128x128xf32>
      %14 = arith.mulf %11, %13 : vector<128x128xf32>
      %15 = arith.truncf %14 : vector<128x128xf32> to vector<128x128xbf16>
      %c0_7 = arith.constant 0 : index
      %c0_8 = arith.constant 0 : index
      %16 = vector.load %arg6[%c0_7, %c0_8] : memref<128x128xbf16, #tpu.memory_space<vmem>>, vector<128x128xbf16>
      %c0_9 = arith.constant 0 : index
      %c0_10 = arith.constant 0 : index
      %17 = vector.load %arg8[%c0_9, %c0_10] : memref<128x128xbf16, #tpu.memory_space<vmem>>, vector<128x128xbf16>
      %cst = arith.constant dense<0.000000e+00> : vector<128x128xf32>
      %18 = tpu.matmul %16, %17, %cst {dimension_numbers = #tpu.dot_dimension_numbers<[1], [0], [0], [1], [0, 0, 1, 1], [], []>} : vector<128x128xbf16>, vector<128x128xbf16>, vector<128x128xf32> -> vector<128x128xf32>
      %c0_11 = arith.constant 0 : index
      %c0_12 = arith.constant 0 : index
      %19 = vector.load %arg9[%c0_11, %c0_12] : memref<128x128xbf16, #tpu.memory_space<vmem>>, vector<128x128xbf16>
      %cst_13 = arith.constant dense<0.000000e+00> : vector<128x128xf32>
      %20 = tpu.matmul %15, %19, %cst_13 {dimension_numbers = #tpu.dot_dimension_numbers<[1], [0], [0], [1], [0, 0, 1, 1], [], []>} : vector<128x128xbf16>, vector<128x128xbf16>, vector<128x128xf32> -> vector<128x128xf32>
      %21 = arith.addf %18, %20 : vector<128x128xf32>
      %c0_14 = arith.constant 0 : index
      %c0_15 = arith.constant 0 : index
      %22 = vector.load %arg10[%c0_14, %c0_15] : memref<1x128xf32, #tpu.memory_space<vmem>>, vector<1x128xf32>
      %23 = vector.broadcast %22 : vector<1x128xf32> to vector<128x128xf32>
      %24 = arith.addf %21, %23 : vector<128x128xf32>
      %cst_16 = arith.constant 0.000000e+00 : f32
      %25 = vector.broadcast %cst_16 : f32 to vector<128x128xf32>
      %26 = arith.maximumf %24, %25 : vector<128x128xf32>
      %27 = arith.truncf %26 : vector<128x128xf32> to vector<128x128xbf16>
      %c0_17 = arith.constant 0 : index
      %c0_18 = arith.constant 0 : index
      %28 = vector.load %arg11[%c0_17, %c0_18] : memref<128x128xbf16, #tpu.memory_space<vmem>>, vector<128x128xbf16>
      tpu.vector_store %arg11[%c0_17, %c0_18], %27 {strides = array<i32>} : memref<128x128xbf16, #tpu.memory_space<vmem>>, vector<128x128xbf16>,
    } else {
    }
    return
  }
  func.func @transform_0(%arg0: i32, %arg1: i32, %arg2: memref<1x1xi32, #tpu.memory_space<smem>>, %arg3: memref<1xi32, #tpu.memory_space<smem>>) -> (i32, i32) {
    %0 = arith.index_cast %arg0 : i32 to index
    %1 = arith.index_cast %arg1 : i32 to index
    %2 = memref.load %arg2[%0, %1] : memref<1x1xi32, #tpu.memory_space<smem>>
    %c0_i32 = arith.constant 0 : i32
    return %arg0, %2 : i32, i32
  }
  func.func @transform_1(%arg0: i32, %arg1: i32, %arg2: memref<1x1xi32, #tpu.memory_space<smem>>, %arg3: memref<1xi32, #tpu.memory_space<smem>>) -> (i32, i32) {
    %0 = arith.index_cast %arg0 : i32 to index
    %1 = arith.index_cast %arg1 : i32 to index
    %2 = memref.load %arg2[%0, %1] : memref<1x1xi32, #tpu.memory_space<smem>>
    %c0_i32 = arith.constant 0 : i32
    %c0_i32_0 = arith.constant 0 : i32
    return %2, %c0_i32 : i32, i32
  }
  func.func @transform_2(%arg0: i32, %arg1: i32, %arg2: memref<1x1xi32, #tpu.memory_space<smem>>, %arg3: memref<1xi32, #tpu.memory_space<smem>>) -> (i32, i32) {
    %c0_i32 = arith.constant 0 : i32
    %c0_i32_0 = arith.constant 0 : i32
    return %arg0, %c0_i32 : i32, i32
  }
  func.func @transform_3(%arg0: i32, %arg1: i32, %arg2: memref<1x1xi32, #tpu.memory_space<smem>>, %arg3: memref<1xi32, #tpu.memory_space<smem>>) -> (i32, i32) {
    %c0_i32 = arith.constant 0 : i32
    %c0_i32_0 = arith.constant 0 : i32
    return %arg0, %c0_i32 : i32, i32
  }
  func.func @transform_4(%arg0: i32, %arg1: i32, %arg2: memref<1x1xi32, #tpu.memory_space<smem>>, %arg3: memref<1xi32, #tpu.memory_space<smem>>) -> (i32, i32) {
    %c0_i32 = arith.constant 0 : i32
    %c0_i32_0 = arith.constant 0 : i32
    %c0_i32_1 = arith.constant 0 : i32
    return %c0_i32, %c0_i32_0 : i32, i32
  }
  func.func @transform_5(%arg0: i32, %arg1: i32, %arg2: memref<1x1xi32, #tpu.memory_space<smem>>, %arg3: memref<1xi32, #tpu.memory_space<smem>>) -> (i32, i32) {
    %c0_i32 = arith.constant 0 : i32
    %c0_i32_0 = arith.constant 0 : i32
    %c0_i32_1 = arith.constant 0 : i32
    return %c0_i32, %c0_i32_0 : i32, i32
  }
  func.func @transform_6(%arg0: i32, %arg1: i32, %arg2: memref<1x1xi32, #tpu.memory_space<smem>>, %arg3: memref<1xi32, #tpu.memory_space<smem>>) -> (i32, i32) {
    %c0_i32 = arith.constant 0 : i32
    %c0_i32_0 = arith.constant 0 : i32
    %c0_i32_1 = arith.constant 0 : i32
    return %c0_i32, %c0_i32_0 : i32, i32
  }
  func.func @transform_7(%arg0: i32, %arg1: i32, %arg2: memref<1x1xi32, #tpu.memory_space<smem>>, %arg3: memref<1xi32, #tpu.memory_space<smem>>) -> (i32, i32) {
    %c0_i32 = arith.constant 0 : i32
    %c0_i32_0 = arith.constant 0 : i32
    return %arg0, %c0_i32 : i32, i32
  }
}

</mosaic_0001>

<llo_original>
// kernel: tpu_custom_call.1
$region0: #{tpu_custom_call.1}
  #allocation0 [shape = 'u32[]', space=smem, size = 0x4, offset = 0x4, fixed_abs, tag = 'smem constant byte address 0x4 - core index']
  #allocation1 [shape = 'u32[144,128]{1,0:T(1,128)}', space=vmem, size = 0x12000, scoped, tag = 'internal scratch']
  #allocation2 [shape = 'f32[128,128]{1,0:T(8,128)}', space=vmem, size = 0x10000, scoped, tag = 'scratch operand']
  #allocation3 [shape = 's32[1]{0}', space=sflag, size = 0x4, scoped, tag = 'scoped memory for tpu_custom_call.1']
  #allocation4 [shape = 's32[1,1]{1,0:T(1,128)S(6)}', space=smem, size = 0x200, scoped, tag = 'prefetched SMEM operand 0']
  #allocation5 [shape = 's32[1]{0:T(128)S(6)}', space=smem, size = 0x200, scoped, tag = 'prefetched SMEM operand 1']
  %s0 = inlined_call_operand.<no memory space> [shape: s32[1,1], index: 0, kind: input, shape index: {}]
  %s1 = inlined_call_operand.<no memory space> [shape: s32[1], index: 1, kind: input, shape index: {}]
  %s2 = inlined_call_operand.hbm [shape: s8[128,128], index: 2, kind: input, shape index: {}]
  %s3 = inlined_call_operand.vmem [shape: bf16[128,128], index: 3, kind: input, shape index: {}]
  %s4 = inlined_call_operand.vmem [shape: bf16[128,128], index: 4, kind: input, shape index: {}]
  %s5 = inlined_call_operand.vmem [shape: f32[128,1], index: 5, kind: input, shape index: {}]
  %s6 = inlined_call_operand.hbm [shape: bf16[128,128], index: 6, kind: input, shape index: {}]
  %s7 = inlined_call_operand.hbm [shape: bf16[128,128], index: 7, kind: input, shape index: {}]
  %s8 = inlined_call_operand.vmem [shape: f32[1,128], index: 8, kind: input, shape index: {}]
  %s9 = inlined_call_operand.hbm [shape: bf16[128,128], index: 9, kind: output, shape index: {}]
  %s10 = sld [smem:[#allocation0]]
  $region62: #{tpu_custom_call.1} parent=0
    _
  %s12 = ssub.s32 1, %s10
  %s13 = scalar_select 0, %s12, %s10
  %14 = sst [smem:[#allocation4]] %s0
  %15 = sst [smem:[#allocation5]] %s1
  $region1: #{tpu_custom_call.1} parent=0
    #allocation6 [shape = 'u8[16384]{0}', space=vmem, size = 0x4000, scoped, tag = 'input window, operand 2, single buffered']
    #allocation7 [shape = 's32[1]{0}', space=sflag, size = 0x4, scoped, tag = 'scoped memory for tpu_custom_call.1']
    #allocation8 [shape = 's32[1]{0}', space=sflag, size = 0x4, scoped, tag = 'scoped memory for tpu_custom_call.1']
    #allocation9 [shape = 'u8[32768]{0}', space=vmem, size = 0x8000, scoped, tag = 'input window, operand 6, single buffered']
    #allocation10 [shape = 's32[1]{0}', space=sflag, size = 0x4, scoped, tag = 'scoped memory for tpu_custom_call.1']
    #allocation11 [shape = 'u8[32768]{0}', space=vmem, size = 0x8000, scoped, tag = 'input window, operand 7, single buffered']
    #allocation12 [shape = 'u8[32768]{0}', space=vmem, size = 0x8000, scoped, tag = 'output window, operand 0, single buffered']
    %16 = vsyncpa [#allocation7], 0
    %17 = vsyncpa [#allocation10], 0
    %18 = vsyncpa [#allocation8], 0
    // Predicated region
    $region2: #{tpu_custom_call.1} parent=1 // pred_check
      _
    $region3: #{tpu_custom_call.1} parent=1 // pred_check_branch
      %20 = sbr.rel (0) target = $region5
    $region4: #{tpu_custom_call.1} parent=1 // pred_region
      %s21 = sadd.s32 0, 0
      %s22 = smul.u32 %s21, 128
      %s23 = sadd.s32 %s22, 0
      %s24 = sld [smem:[#allocation4 + %s23]]
      %s26 = ssub.s32 512, 512
      %27 = vsyncadd [#allocation7], %s26
      %s28 = smul.addr %s24, 128
      %s29 = scalar_lea.hbm %s2, %s28
      %s30 = sshll.u32 [#allocation6], 4
      %s31 = int_to_ptr.vmem [resolvable:$true] %s30
      %36 = dma.hbm_to_vmem [thread:$0]  %s29, 512, %s31, [#allocation7], 128, 128, 8
    $region5: #{tpu_custom_call.1} parent=1 // pred_fallthru
      _
    // Predicated region
    $region6: #{tpu_custom_call.1} parent=1 // pred_check
      _
    $region7: #{tpu_custom_call.1} parent=1 // pred_check_branch
      %38 = sbr.rel (0) target = $region9
    $region8: #{tpu_custom_call.1} parent=1 // pred_region
      %s39 = sadd.s32 0, 0
      %s40 = smul.u32 %s39, 128
      %s41 = sadd.s32 %s40, 0
      %s42 = sld [smem:[#allocation4 + %s41]]
      %s43 = smul.u32 16, %s42
      %p44 = scmp.lt.s32.totalorder %s43, 15
      %s45 = scalar_select %p44, %s43, 15
      %s46 = smul.addr %s45, 4
      %s47 = scalar_lea.vmem %s3, %s46
      %s48 = sadd.s32 0, 0
      %s49 = smul.u32 %s48, 128
      %s50 = sadd.s32 %s49, 0
      %s51 = sld [smem:[#allocation4 + %s50]]
      %s52 = smul.u32 16, %s51
    $region9: #{tpu_custom_call.1} parent=1 // pred_fallthru
      _
    // Predicated region
    $region10: #{tpu_custom_call.1} parent=1 // pred_check
      _
    $region11: #{tpu_custom_call.1} parent=1 // pred_check_branch
      %54 = sbr.rel (0) target = $region13
    $region12: #{tpu_custom_call.1} parent=1 // pred_region
      _
    $region13: #{tpu_custom_call.1} parent=1 // pred_fallthru
      _
    // Predicated region
    $region14: #{tpu_custom_call.1} parent=1 // pred_check
      _
    $region15: #{tpu_custom_call.1} parent=1 // pred_check_branch
      %56 = sbr.rel (0) target = $region17
    $region16: #{tpu_custom_call.1} parent=1 // pred_region
      _
    $region17: #{tpu_custom_call.1} parent=1 // pred_fallthru
      _
    // Predicated region
    $region18: #{tpu_custom_call.1} parent=1 // pred_check
      _
    $region19: #{tpu_custom_call.1} parent=1 // pred_check_branch
      %58 = sbr.rel (0) target = $region21
    $region20: #{tpu_custom_call.1} parent=1 // pred_region
      %s60 = ssub.s32 1024, 1024
      %61 = vsyncadd [#allocation10], %s60
      %s62 = sshll.u32 [#allocation9], 4
      %s63 = int_to_ptr.vmem [resolvable:$true] %s62
      %68 = dma.hbm_to_vmem [thread:$0]  %s6, 1024, %s63, [#allocation10], 64, 64, 4
    $region21: #{tpu_custom_call.1} parent=1 // pred_fallthru
      _
    // Predicated region
    $region22: #{tpu_custom_call.1} parent=1 // pred_check
      _
    $region23: #{tpu_custom_call.1} parent=1 // pred_check_branch
      %70 = sbr.rel (0) target = $region25
    $region24: #{tpu_custom_call.1} parent=1 // pred_region
      %s72 = ssub.s32 1024, 1024
      %73 = vsyncadd [#allocation10], %s72
      %s74 = sshll.u32 [#allocation11], 4
      %s75 = int_to_ptr.vmem [resolvable:$true] %s74
      %80 = dma.hbm_to_vmem [thread:$0]  %s7, 1024, %s75, [#allocation10], 64, 64, 4
    $region25: #{tpu_custom_call.1} parent=1 // pred_fallthru
      _
    // Predicated region
    $region26: #{tpu_custom_call.1} parent=1 // pred_check
      _
    $region27: #{tpu_custom_call.1} parent=1 // pred_check_branch
      %82 = sbr.rel (0) target = $region29
    $region28: #{tpu_custom_call.1} parent=1 // pred_region
      _
    $region29: #{tpu_custom_call.1} parent=1 // pred_fallthru
      _
    // Predicated region
    $region30: #{tpu_custom_call.1} parent=1 // pred_check
      _
    $region31: #{tpu_custom_call.1} parent=1 // pred_check_branch
      %84 = sbr.rel (0) target = $region33
    $region32: #{tpu_custom_call.1} parent=1 // pred_region
      %85 = dma.done [#allocation7], 512
    $region33: #{tpu_custom_call.1} parent=1 // pred_fallthru
      _
    // Predicated region
    $region34: #{tpu_custom_call.1} parent=1 // pred_check
      _
    $region35: #{tpu_custom_call.1} parent=1 // pred_check_branch
      %87 = sbr.rel (0) target = $region37
    $region36: #{tpu_custom_call.1} parent=1 // pred_region
      %88 = dma.done [#allocation10], 1024
    $region37: #{tpu_custom_call.1} parent=1 // pred_fallthru
      _
    // Predicated region
    $region38: #{tpu_custom_call.1} parent=1 // pred_check
      _
    $region39: #{tpu_custom_call.1} parent=1 // pred_check_branch
      %90 = sbr.rel (0) target = $region41
    $region40: #{tpu_custom_call.1} parent=1 // pred_region
      %91 = dma.done [#allocation10], 1024
    $region41: #{tpu_custom_call.1} parent=1 // pred_fallthru
      _
    %s92 = sadd.s32 0, 0
    %s93 = smul.u32 %s92, 128
    %s94 = sadd.s32 %s93, 0
    %s95 = sld [smem:[#allocation4 + %s94]]
    %s96 = smul.u32 16, %s95
    %p97 = scmp.lt.s32.totalorder %s96, 15
    %s98 = scalar_select %p97, %s96, 15
    %s99 = smul.addr %s98, 4
    %s100 = scalar_lea.vmem %s3, %s99
    %s101 = sadd.s32 0, 0
    %s102 = smul.u32 %s101, 128
    %s103 = sadd.s32 %s102, 0
    %s104 = sld [smem:[#allocation4 + %s103]]
    %s105 = sadd.s32 0, 0
    %s106 = smul.u32 %s105, 128
    %s107 = sadd.s32 %s106, 0
    %s108 = sld [smem:[#allocation4 + %s107]]
    %s109 = smul.u32 16, %s108
    %p110 = scmp.lt.s32.totalorder %s109, 15
    %s111 = scalar_select %p110, %s109, 15
    %s112 = smul.addr %s111, 4
    %s113 = scalar_lea.vmem %s3, %s112
    %s114 = sadd.s32 0, 0
    %s115 = smul.u32 %s114, 128
    %s116 = sadd.s32 %s115, 0
    %s117 = sld [smem:[#allocation4 + %s116]]
    %s118 = smul.u32 16, %s117
    %p120 = scmp.eq.s32.totalorder 0, 0
    // Predicated region
    $region42: #{tpu_custom_call.1} parent=1 // pred_check
      %p121 = pneg %p120
    $region43: #{tpu_custom_call.1} parent=1 // pred_check_branch
      %123 = sbr.rel (%p121) target = $region45
    $region44: #{tpu_custom_call.1} parent=1 // pred_region
      %124 = vst [vmem:[#allocation2] sm:$0xff] 0.0
      %125 = vst [vmem:[#allocation2 + $0x8] sm:$0xff] 0.0
      %126 = vst [vmem:[#allocation2 + $0x10] sm:$0xff] 0.0
      %127 = vst [vmem:[#allocation2 + $0x18] sm:$0xff] 0.0
      %128 = vst [vmem:[#allocation2 + $0x20] sm:$0xff] 0.0
      %129 = vst [vmem:[#allocation2 + $0x28] sm:$0xff] 0.0
      %130 = vst [vmem:[#allocation2 + $0x30] sm:$0xff] 0.0
      %131 = vst [vmem:[#allocation2 + $0x38] sm:$0xff] 0.0
      %132 = vst [vmem:[#allocation2 + $0x40] sm:$0xff] 0.0
      %133 = vst [vmem:[#allocation2 + $0x48] sm:$0xff] 0.0
      %134 = vst [vmem:[#allocation2 + $0x50] sm:$0xff] 0.0
      %135 = vst [vmem:[#allocation2 + $0x58] sm:$0xff] 0.0
      %136 = vst [vmem:[#allocation2 + $0x60] sm:$0xff] 0.0
      %137 = vst [vmem:[#allocation2 + $0x68] sm:$0xff] 0.0
      %138 = vst [vmem:[#allocation2 + $0x70] sm:$0xff] 0.0
      %139 = vst [vmem:[#allocation2 + $0x78] sm:$0xff] 0.0
    $region45: #{tpu_custom_call.1} parent=1 // pred_fallthru
      _
    %s140 = sld [smem:[#allocation5]]
    %p141 = scmp.lt.s32.totalorder 0, %s140
    // Predicated region
    $region46: #{tpu_custom_call.1} parent=1 // pred_check
      %p142 = pneg %p141
    $region47: #{tpu_custom_call.1} parent=1 // pred_check_branch
      %144 = sbr.rel (%p142) target = $region49
    $region48: #{tpu_custom_call.1} parent=1 // pred_region
      %v145 = vld [vmem:[#allocation2] sm:$0xff]
      %v146 = vld [vmem:[#allocation2 + $0x8] sm:$0xff]
      %v147 = vld [vmem:[#allocation2 + $0x10] sm:$0xff]
      %v148 = vld [vmem:[#allocation2 + $0x18] sm:$0xff]
      %v149 = vld [vmem:[#allocation2 + $0x20] sm:$0xff]
      %v150 = vld [vmem:[#allocation2 + $0x28] sm:$0xff]
      %v151 = vld [vmem:[#allocation2 + $0x30] sm:$0xff]
      %v152 = vld [vmem:[#allocation2 + $0x38] sm:$0xff]
      %v153 = vld [vmem:[#allocation2 + $0x40] sm:$0xff]
      %v154 = vld [vmem:[#allocation2 + $0x48] sm:$0xff]
      %v155 = vld [vmem:[#allocation2 + $0x50] sm:$0xff]
      %v156 = vld [vmem:[#allocation2 + $0x58] sm:$0xff]
      %v157 = vld [vmem:[#allocation2 + $0x60] sm:$0xff]
      %v158 = vld [vmem:[#allocation2 + $0x68] sm:$0xff]
      %v159 = vld [vmem:[#allocation2 + $0x70] sm:$0xff]
      %v160 = vld [vmem:[#allocation2 + $0x78] sm:$0xff]
      %v161 = vld [vmem:[#allocation6] sm:$0xff]
      %v162 = vld [vmem:[#allocation6 + $0x8] sm:$0xff]
      %v163 = vld [vmem:[#allocation6 + $0x10] sm:$0xff]
      %v164 = vld [vmem:[#allocation6 + $0x18] sm:$0xff]
      %v165 = vunpack.c.l.s8.bf16 %v161
      %v166 = vunpack.c.h.s8.bf16 %v161
      %v167 = vunpack.c.l.s8.bf16 %v162
      %v168 = vunpack.c.h.s8.bf16 %v162
      %v169 = vunpack.c.l.s8.bf16 %v163
      %v170 = vunpack.c.h.s8.bf16 %v163
      %v171 = vunpack.c.l.s8.bf16 %v164
      %v172 = vunpack.c.h.s8.bf16 %v164
      %v173 = vld [vmem:[%s113] sm:$0xf]
      %v174 = vld [vmem:[%s113 + $0x4] sm:$0xf]
      %v175 = vld [vmem:[%s113 + $0x8] sm:$0xf]
      %v176 = vld [vmem:[%s113 + $0xc] sm:$0xf]
      %v177 = vld [vmem:[%s113 + $0x10] sm:$0xf]
      %v178 = vld [vmem:[%s113 + $0x14] sm:$0xf]
      %v179 = vld [vmem:[%s113 + $0x18] sm:$0xf]
      %v180 = vld [vmem:[%s113 + $0x1c] sm:$0xf]
      %v181 = vld [vmem:[%s113 + $0x20] sm:$0xf]
      %v182 = vld [vmem:[%s113 + $0x24] sm:$0xf]
      %v183 = vld [vmem:[%s113 + $0x28] sm:$0xf]
      %v184 = vld [vmem:[%s113 + $0x2c] sm:$0xf]
      %v185 = vld [vmem:[%s113 + $0x30] sm:$0xf]
      %v186 = vld [vmem:[%s113 + $0x34] sm:$0xf]
      %v187 = vld [vmem:[%s113 + $0x38] sm:$0xf]
      %v188 = vld [vmem:[%s113 + $0x3c] sm:$0xf]
      %v205 = vunpack.c.l.b16 %v173
      %v206 = vunpack.c.l.b16 %v174
      %v207 = vunpack.c.l.b16 %v175
      %v208 = vunpack.c.l.b16 %v176
      %v209 = vunpack.c.l.b16 %v177
      %v210 = vunpack.c.l.b16 %v178
      %v211 = vunpack.c.l.b16 %v179
      %v212 = vunpack.c.l.b16 %v180
      %v213 = vunpack.c.l.b16 %v181
      %v214 = vunpack.c.l.b16 %v182
      %v215 = vunpack.c.l.b16 %v183
      %v216 = vunpack.c.l.b16 %v184
      %v217 = vunpack.c.l.b16 %v185
      %v218 = vunpack.c.l.b16 %v186
      %v219 = vunpack.c.l.b16 %v187
      %v220 = vunpack.c.l.b16 %v188
      %v221 = vpack.c.b16 %v206, %v205
      %v222 = vpack.c.b16 %v208, %v207
      %v223 = vpack.c.b16 %v210, %v209
      %v224 = vpack.c.b16 %v212, %v211
      %v225 = vpack.c.b16 %v214, %v213
      %v226 = vpack.c.b16 %v216, %v215
      %v227 = vpack.c.b16 %v218, %v217
      %v228 = vpack.c.b16 %v220, %v219
      %237 = vmatprep.subr.bf16.mxu0 0
      %238 = vmatpush1.bf16.msra.mxu0 %v221
      %239 = vmatprep.subr.bf16.mxu0 0
      %240 = vmatpush1.bf16.msra.mxu0 %v222
      %241 = vmatprep.subr.bf16.mxu0 0
      %242 = vmatpush1.bf16.msra.mxu0 %v223
      %243 = vmatprep.subr.bf16.mxu0 0
      %244 = vmatpush1.bf16.msra.mxu0 %v224
      %245 = vmatprep.subr.bf16.mxu0 0
      %246 = vmatpush1.bf16.msra.mxu0 %v225
      %247 = vmatprep.subr.bf16.mxu0 0
      %248 = vmatpush1.bf16.msra.mxu0 %v226
      %249 = vmatprep.subr.bf16.mxu0 0
      %250 = vmatpush1.bf16.msra.mxu0 %v227
      %251 = vmatprep.subr.bf16.mxu0 0
      %252 = vmatpush1.bf16.msra.mxu0 %v228
      %253 = vmatprep.subr.bf16.mxu0 0
      %254 = vmatpush1.bf16.msra.mxu0 0
      %255 = vmatprep.subr.bf16.mxu0 0
      %256 = vmatpush1.bf16.msra.mxu0 0
      %257 = vmatprep.subr.bf16.mxu0 0
      %258 = vmatpush1.bf16.msra.mxu0 0
      %259 = vmatprep.subr.bf16.mxu0 0
      %260 = vmatpush1.bf16.msra.mxu0 0
      %261 = vmatprep.subr.bf16.mxu0 0
      %262 = vmatpush1.bf16.msra.mxu0 0
      %263 = vmatprep.subr.bf16.mxu0 0
      %264 = vmatpush1.bf16.msra.mxu0 0
      %265 = vmatprep.subr.bf16.mxu0 0
      %266 = vmatpush1.bf16.msra.mxu0 0
      %267 = vmatprep.subr.bf16.mxu0 0
      %268 = vmatpush1.bf16.msra.mxu0 0
      %269 = vmatprep.mubr.bf16.mxu0 0
      %270 = vmatmul.mubr.bf16.gmra.mrb[0].mxu0 %v165
      %v271 = vpop.f32.mrb[0].mxu0
      %v272 = vadd.f32 0.0, %v271
      %v273 = vpop.f32.mrb[0].mxu0
      %v274 = vpop.f32.mrb[0].mxu0
      %v275 = vadd.f32 0.0, %v274
      %v276 = vpop.f32.mrb[0].mxu0
      %277 = vmatprep.mubr.bf16.mxu0 0
      %278 = vmatmul.mubr.bf16.gmra.mrb[0].mxu0 %v166
      %v279 = vpop.f32.mrb[0].mxu0
      %v280 = vadd.f32 0.0, %v279
      %v281 = vpop.f32.mrb[0].mxu0
      %v282 = vpop.f32.mrb[0].mxu0
      %v283 = vadd.f32 0.0, %v282
      %v284 = vpop.f32.mrb[0].mxu0
      %285 = vmatprep.mubr.bf16.mxu0 0
      %286 = vmatmul.mubr.bf16.gmra.mrb[0].mxu0 %v167
      %v287 = vpop.f32.mrb[0].mxu0
      %v288 = vadd.f32 0.0, %v287
      %v289 = vpop.f32.mrb[0].mxu0
      %v290 = vpop.f32.mrb[0].mxu0
      %v291 = vadd.f32 0.0, %v290
      %v292 = vpop.f32.mrb[0].mxu0
      %293 = vmatprep.mubr.bf16.mxu0 0
      %294 = vmatmul.mubr.bf16.gmra.mrb[0].mxu0 %v168
      %v295 = vpop.f32.mrb[0].mxu0
      %v296 = vadd.f32 0.0, %v295
      %v297 = vpop.f32.mrb[0].mxu0
      %v298 = vpop.f32.mrb[0].mxu0
      %v299 = vadd.f32 0.0, %v298
      %v300 = vpop.f32.mrb[0].mxu0
      %301 = vmatprep.mubr.bf16.mxu0 0
      %302 = vmatmul.mubr.bf16.gmra.mrb[0].mxu0 %v169
      %v303 = vpop.f32.mrb[0].mxu0
      %v304 = vadd.f32 0.0, %v303
      %v305 = vpop.f32.mrb[0].mxu0
      %v306 = vpop.f32.mrb[0].mxu0
      %v307 = vadd.f32 0.0, %v306
      %v308 = vpop.f32.mrb[0].mxu0
      %309 = vmatprep.mubr.bf16.mxu0 0
      %310 = vmatmul.mubr.bf16.gmra.mrb[0].mxu0 %v170
      %v311 = vpop.f32.mrb[0].mxu0
      %v312 = vadd.f32 0.0, %v311
      %v313 = vpop.f32.mrb[0].mxu0
      %v314 = vpop.f32.mrb[0].mxu0
      %v315 = vadd.f32 0.0, %v314
      %v316 = vpop.f32.mrb[0].mxu0
      %317 = vmatprep.mubr.bf16.mxu0 0
      %318 = vmatmul.mubr.bf16.gmra.mrb[0].mxu0 %v171
      %v319 = vpop.f32.mrb[0].mxu0
      %v320 = vadd.f32 0.0, %v319
      %v321 = vpop.f32.mrb[0].mxu0
      %v322 = vpop.f32.mrb[0].mxu0
      %v323 = vadd.f32 0.0, %v322
      %v324 = vpop.f32.mrb[0].mxu0
      %325 = vmatprep.mubr.bf16.mxu0 0
      %326 = vmatmul.mubr.bf16.gmra.mrb[0].mxu0 %v172
      %v327 = vpop.f32.mrb[0].mxu0
      %v328 = vadd.f32 0.0, %v327
      %v329 = vpop.f32.mrb[0].mxu0
      %v330 = vpop.f32.mrb[0].mxu0
      %v331 = vadd.f32 0.0, %v330
      %v332 = vpop.f32.mrb[0].mxu0
      %333 = vdwg.mxu0
      %v334 = vadd.f32 %v145, %v272
      %v335 = vadd.f32 %v146, %v275
      %v336 = vadd.f32 %v147, %v280
      %v337 = vadd.f32 %v148, %v283
      %v338 = vadd.f32 %v149, %v288
      %v339 = vadd.f32 %v150, %v291
      %v340 = vadd.f32 %v151, %v296
      %v341 = vadd.f32 %v152, %v299
      %v342 = vadd.f32 %v153, %v304
      %v343 = vadd.f32 %v154, %v307
      %v344 = vadd.f32 %v155, %v312
      %v345 = vadd.f32 %v156, %v315
      %v346 = vadd.f32 %v157, %v320
      %v347 = vadd.f32 %v158, %v323
      %v348 = vadd.f32 %v159, %v328
      %v349 = vadd.f32 %v160, %v331
      %350 = vst [vmem:[#allocation2] sm:$0xff] %v334
      %351 = vst [vmem:[#allocation2 + $0x8] sm:$0xff] %v335
      %352 = vst [vmem:[#allocation2 + $0x10] sm:$0xff] %v336
      %353 = vst [vmem:[#allocation2 + $0x18] sm:$0xff] %v337
      %354 = vst [vmem:[#allocation2 + $0x20] sm:$0xff] %v338
      %355 = vst [vmem:[#allocation2 + $0x28] sm:$0xff] %v339
      %356 = vst [vmem:[#allocation2 + $0x30] sm:$0xff] %v340
      %357 = vst [vmem:[#allocation2 + $0x38] sm:$0xff] %v341
      %358 = vst [vmem:[#allocation2 + $0x40] sm:$0xff] %v342
      %359 = vst [vmem:[#allocation2 + $0x48] sm:$0xff] %v343
      %360 = vst [vmem:[#allocation2 + $0x50] sm:$0xff] %v344
      %361 = vst [vmem:[#allocation2 + $0x58] sm:$0xff] %v345
      %362 = vst [vmem:[#allocation2 + $0x60] sm:$0xff] %v346
      %363 = vst [vmem:[#allocation2 + $0x68] sm:$0xff] %v347
      %364 = vst [vmem:[#allocation2 + $0x70] sm:$0xff] %v348
      %365 = vst [vmem:[#allocation2 + $0x78] sm:$0xff] %v349
    $region49: #{tpu_custom_call.1} parent=1 // pred_fallthru
      _
    // Predicated region
    $region50: #{tpu_custom_call.1} parent=1 // pred_check
      %p366 = pneg %p120
    $region51: #{tpu_custom_call.1} parent=1 // pred_check_branch
      %368 = sbr.rel (%p366) target = $region53
    $region52: #{tpu_custom_call.1} parent=1 // pred_region
      %v369 = vld [vmem:[#allocation2] sm:$0xff]
      %v370 = vld [vmem:[#allocation2 + $0x8] sm:$0xff]
      %v371 = vld [vmem:[#allocation2 + $0x10] sm:$0xff]
      %v372 = vld [vmem:[#allocation2 + $0x18] sm:$0xff]
      %v373 = vld [vmem:[#allocation2 + $0x20] sm:$0xff]
      %v374 = vld [vmem:[#allocation2 + $0x28] sm:$0xff]
      %v375 = vld [vmem:[#allocation2 + $0x30] sm:$0xff]
      %v376 = vld [vmem:[#allocation2 + $0x38] sm:$0xff]
      %v377 = vld [vmem:[#allocation2 + $0x40] sm:$0xff]
      %v378 = vld [vmem:[#allocation2 + $0x48] sm:$0xff]
      %v379 = vld [vmem:[#allocation2 + $0x50] sm:$0xff]
      %v380 = vld [vmem:[#allocation2 + $0x58] sm:$0xff]
      %v381 = vld [vmem:[#allocation2 + $0x60] sm:$0xff]
      %v382 = vld [vmem:[#allocation2 + $0x68] sm:$0xff]
      %v383 = vld [vmem:[#allocation2 + $0x70] sm:$0xff]
      %v384 = vld [vmem:[#allocation2 + $0x78] sm:$0xff]
      %v385 = vld [vmem:[%s5] sm:$0xff]
      %v386 = vld [vmem:[%s5 + $0x8] sm:$0xff]
      %v387 = vld [vmem:[%s5 + $0x10] sm:$0xff]
      %v388 = vld [vmem:[%s5 + $0x18] sm:$0xff]
      %v389 = vld [vmem:[%s5 + $0x20] sm:$0xff]
      %v390 = vld [vmem:[%s5 + $0x28] sm:$0xff]
      %v391 = vld [vmem:[%s5 + $0x30] sm:$0xff]
      %v392 = vld [vmem:[%s5 + $0x38] sm:$0xff]
      %v393 = vld [vmem:[%s5 + $0x40] sm:$0xff]
      %v394 = vld [vmem:[%s5 + $0x48] sm:$0xff]
      %v395 = vld [vmem:[%s5 + $0x50] sm:$0xff]
      %v396 = vld [vmem:[%s5 + $0x58] sm:$0xff]
      %v397 = vld [vmem:[%s5 + $0x60] sm:$0xff]
      %v398 = vld [vmem:[%s5 + $0x68] sm:$0xff]
      %v399 = vld [vmem:[%s5 + $0x70] sm:$0xff]
      %v400 = vld [vmem:[%s5 + $0x78] sm:$0xff]
      %402 = vset.pattern.permute.xlu0 0
      %403 = vperm.xlu0 %402, %v385
      %v404 = vpop.permute.xlu0 %403
      %407 = vset.pattern.permute.xlu0 0
      %408 = vperm.xlu0 %407, %v386
      %v409 = vpop.permute.xlu0 %408
      %412 = vset.pattern.permute.xlu0 0
      %413 = vperm.xlu0 %412, %v387
      %v414 = vpop.permute.xlu0 %413
      %417 = vset.pattern.permute.xlu0 0
      %418 = vperm.xlu0 %417, %v388
      %v419 = vpop.permute.xlu0 %418
      %422 = vset.pattern.permute.xlu0 0
      %423 = vperm.xlu0 %422, %v389
      %v424 = vpop.permute.xlu0 %423
      %427 = vset.pattern.permute.xlu0 0
      %428 = vperm.xlu0 %427, %v390
      %v429 = vpop.permute.xlu0 %428
      %432 = vset.pattern.permute.xlu0 0
      %433 = vperm.xlu0 %432, %v391
      %v434 = vpop.permute.xlu0 %433
      %437 = vset.pattern.permute.xlu0 0
      %438 = vperm.xlu0 %437, %v392
      %v439 = vpop.permute.xlu0 %438
      %442 = vset.pattern.permute.xlu0 0
      %443 = vperm.xlu0 %442, %v393
      %v444 = vpop.permute.xlu0 %443
      %447 = vset.pattern.permute.xlu0 0
      %448 = vperm.xlu0 %447, %v394
      %v449 = vpop.permute.xlu0 %448
      %452 = vset.pattern.permute.xlu0 0
      %453 = vperm.xlu0 %452, %v395
      %v454 = vpop.permute.xlu0 %453
      %457 = vset.pattern.permute.xlu0 0
      %458 = vperm.xlu0 %457, %v396
      %v459 = vpop.permute.xlu0 %458
      %462 = vset.pattern.permute.xlu0 0
      %463 = vperm.xlu0 %462, %v397
      %v464 = vpop.permute.xlu0 %463
      %467 = vset.pattern.permute.xlu0 0
      %468 = vperm.xlu0 %467, %v398
      %v469 = vpop.permute.xlu0 %468
      %472 = vset.pattern.permute.xlu0 0
      %473 = vperm.xlu0 %472, %v399
      %v474 = vpop.permute.xlu0 %473
      %477 = vset.pattern.permute.xlu0 0
      %478 = vperm.xlu0 %477, %v400
      %v479 = vpop.permute.xlu0 %478
      %v481 = vmul.f32 %v369, %v404
      %v482 = vmul.f32 %v370, %v409
      %v483 = vmul.f32 %v371, %v414
      %v484 = vmul.f32 %v372, %v419
      %v485 = vmul.f32 %v373, %v424
      %v486 = vmul.f32 %v374, %v429
      %v487 = vmul.f32 %v375, %v434
      %v488 = vmul.f32 %v376, %v439
      %v489 = vmul.f32 %v377, %v444
      %v490 = vmul.f32 %v378, %v449
      %v491 = vmul.f32 %v379, %v454
      %v492 = vmul.f32 %v380, %v459
      %v493 = vmul.f32 %v381, %v464
      %v494 = vmul.f32 %v382, %v469
      %v495 = vmul.f32 %v383, %v474
      %v496 = vmul.f32 %v384, %v479
      %v497 = vpack.c.bf16 %v482, %v481
      %v498 = vpack.c.bf16 %v484, %v483
      %v499 = vpack.c.bf16 %v486, %v485
      %v500 = vpack.c.bf16 %v488, %v487
      %v501 = vpack.c.bf16 %v490, %v489
      %v502 = vpack.c.bf16 %v492, %v491
      %v503 = vpack.c.bf16 %v494, %v493
      %v504 = vpack.c.bf16 %v496, %v495
      %v505 = vld [vmem:[%s4] sm:$0xf]
      %v506 = vld [vmem:[%s4 + $0x4] sm:$0xf]
      %v507 = vld [vmem:[%s4 + $0x8] sm:$0xf]
      %v508 = vld [vmem:[%s4 + $0xc] sm:$0xf]
      %v509 = vld [vmem:[%s4 + $0x10] sm:$0xf]
      %v510 = vld [vmem:[%s4 + $0x14] sm:$0xf]
      %v511 = vld [vmem:[%s4 + $0x18] sm:$0xf]
      %v512 = vld [vmem:[%s4 + $0x1c] sm:$0xf]
      %v513 = vld [vmem:[%s4 + $0x20] sm:$0xf]
      %v514 = vld [vmem:[%s4 + $0x24] sm:$0xf]
      %v515 = vld [vmem:[%s4 + $0x28] sm:$0xf]
      %v516 = vld [vmem:[%s4 + $0x2c] sm:$0xf]
      %v517 = vld [vmem:[%s4 + $0x30] sm:$0xf]
      %v518 = vld [vmem:[%s4 + $0x34] sm:$0xf]
      %v519 = vld [vmem:[%s4 + $0x38] sm:$0xf]
      %v520 = vld [vmem:[%s4 + $0x3c] sm:$0xf]
      %v521 = vld [vmem:[#allocation9] sm:$0xf]
      %v522 = vld [vmem:[#allocation9 + $0x4] sm:$0xf]
      %v523 = vld [vmem:[#allocation9 + $0x8] sm:$0xf]
      %v524 = vld [vmem:[#allocation9 + $0xc] sm:$0xf]
      %v525 = vld [vmem:[#allocation9 + $0x10] sm:$0xf]
      %v526 = vld [vmem:[#allocation9 + $0x14] sm:$0xf]
      %v527 = vld [vmem:[#allocation9 + $0x18] sm:$0xf]
      %v528 = vld [vmem:[#allocation9 + $0x1c] sm:$0xf]
      %v529 = vld [vmem:[#allocation9 + $0x20] sm:$0xf]
      %v530 = vld [vmem:[#allocation9 + $0x24] sm:$0xf]
      %v531 = vld [vmem:[#allocation9 + $0x28] sm:$0xf]
      %v532 = vld [vmem:[#allocation9 + $0x2c] sm:$0xf]
      %v533 = vld [vmem:[#allocation9 + $0x30] sm:$0xf]
      %v534 = vld [vmem:[#allocation9 + $0x34] sm:$0xf]
      %v535 = vld [vmem:[#allocation9 + $0x38] sm:$0xf]
      %v536 = vld [vmem:[#allocation9 + $0x3c] sm:$0xf]
      %v537 = vld [vmem:[#allocation11] sm:$0xf]
      %v538 = vld [vmem:[#allocation11 + $0x4] sm:$0xf]
      %v539 = vld [vmem:[#allocation11 + $0x8] sm:$0xf]
      %v540 = vld [vmem:[#allocation11 + $0xc] sm:$0xf]
      %v541 = vld [vmem:[#allocation11 + $0x10] sm:$0xf]
      %v542 = vld [vmem:[#allocation11 + $0x14] sm:$0xf]
      %v543 = vld [vmem:[#allocation11 + $0x18] sm:$0xf]
      %v544 = vld [vmem:[#allocation11 + $0x1c] sm:$0xf]
      %v545 = vld [vmem:[#allocation11 + $0x20] sm:$0xf]
      %v546 = vld [vmem:[#allocation11 + $0x24] sm:$0xf]
      %v547 = vld [vmem:[#allocation11 + $0x28] sm:$0xf]
      %v548 = vld [vmem:[#allocation11 + $0x2c] sm:$0xf]
      %v549 = vld [vmem:[#allocation11 + $0x30] sm:$0xf]
      %v550 = vld [vmem:[#allocation11 + $0x34] sm:$0xf]
      %v551 = vld [vmem:[#allocation11 + $0x38] sm:$0xf]
      %v552 = vld [vmem:[#allocation11 + $0x3c] sm:$0xf]
      %v569 = vunpack.c.l.b16 %v537
      %v570 = vunpack.c.l.b16 %v538
      %v571 = vunpack.c.l.b16 %v539
      %v572 = vunpack.c.l.b16 %v540
      %v573 = vunpack.c.l.b16 %v541
      %v574 = vunpack.c.l.b16 %v542
      %v575 = vunpack.c.l.b16 %v543
      %v576 = vunpack.c.l.b16 %v544
      %v577 = vunpack.c.l.b16 %v545
      %v578 = vunpack.c.l.b16 %v546
      %v579 = vunpack.c.l.b16 %v547
      %v580 = vunpack.c.l.b16 %v548
      %v581 = vunpack.c.l.b16 %v549
      %v582 = vunpack.c.l.b16 %v550
      %v583 = vunpack.c.l.b16 %v551
      %v584 = vunpack.c.l.b16 %v552
      %v585 = vpack.c.b16 %v570, %v569
      %v586 = vpack.c.b16 %v572, %v571
      %v587 = vpack.c.b16 %v574, %v573
      %v588 = vpack.c.b16 %v576, %v575
      %v589 = vpack.c.b16 %v578, %v577
      %v590 = vpack.c.b16 %v580, %v579
      %v591 = vpack.c.b16 %v582, %v581
      %v592 = vpack.c.b16 %v584, %v583
      %601 = vmatprep.subr.bf16.mxu0 0
      %602 = vmatpush1.bf16.msra.mxu0 %v585
      %603 = vmatprep.subr.bf16.mxu0 0
      %604 = vmatpush1.bf16.msra.mxu0 %v586
      %605 = vmatprep.subr.bf16.mxu0 0
      %606 = vmatpush1.bf16.msra.mxu0 %v587
      %607 = vmatprep.subr.bf16.mxu0 0
      %608 = vmatpush1.bf16.msra.mxu0 %v588
      %609 = vmatprep.subr.bf16.mxu0 0
      %610 = vmatpush1.bf16.msra.mxu0 %v589
      %611 = vmatprep.subr.bf16.mxu0 0
      %612 = vmatpush1.bf16.msra.mxu0 %v590
      %613 = vmatprep.subr.bf16.mxu0 0
      %614 = vmatpush1.bf16.msra.mxu0 %v591
      %615 = vmatprep.subr.bf16.mxu0 0
      %616 = vmatpush1.bf16.msra.mxu0 %v592
      %617 = vmatprep.subr.bf16.mxu0 0
      %618 = vmatpush1.bf16.msra.mxu0 0
      %619 = vmatprep.subr.bf16.mxu0 0
      %620 = vmatpush1.bf16.msra.mxu0 0
      %621 = vmatprep.subr.bf16.mxu0 0
      %622 = vmatpush1.bf16.msra.mxu0 0
      %623 = vmatprep.subr.bf16.mxu0 0
      %624 = vmatpush1.bf16.msra.mxu0 0
      %625 = vmatprep.subr.bf16.mxu0 0
      %626 = vmatpush1.bf16.msra.mxu0 0
      %627 = vmatprep.subr.bf16.mxu0 0
      %628 = vmatpush1.bf16.msra.mxu0 0
      %629 = vmatprep.subr.bf16.mxu0 0
      %630 = vmatpush1.bf16.msra.mxu0 0
      %631 = vmatprep.subr.bf16.mxu0 0
      %632 = vmatpush1.bf16.msra.mxu0 0
      %633 = vmatprep.mubr.bf16.mxu0 0
      %634 = vmatmul.mubr.bf16.gmra.mrb[0].mxu0 %v497
      %v635 = vpop.f32.mrb[0].mxu0
      %v636 = vadd.f32 0.0, %v635
      %v637 = vpop.f32.mrb[0].mxu0
      %v638 = vpop.f32.mrb[0].mxu0
      %v639 = vadd.f32 0.0, %v638
      %v640 = vpop.f32.mrb[0].mxu0
      %641 = vmatprep.mubr.bf16.mxu0 0
      %642 = vmatmul.mubr.bf16.gmra.mrb[0].mxu0 %v498
      %v643 = vpop.f32.mrb[0].mxu0
      %v644 = vadd.f32 0.0, %v643
      %v645 = vpop.f32.mrb[0].mxu0
      %v646 = vpop.f32.mrb[0].mxu0
      %v647 = vadd.f32 0.0, %v646
      %v648 = vpop.f32.mrb[0].mxu0
      %649 = vmatprep.mubr.bf16.mxu0 0
      %650 = vmatmul.mubr.bf16.gmra.mrb[0].mxu0 %v499
      %v651 = vpop.f32.mrb[0].mxu0
      %v652 = vadd.f32 0.0, %v651
      %v653 = vpop.f32.mrb[0].mxu0
      %v654 = vpop.f32.mrb[0].mxu0
      %v655 = vadd.f32 0.0, %v654
      %v656 = vpop.f32.mrb[0].mxu0
      %657 = vmatprep.mubr.bf16.mxu0 0
      %658 = vmatmul.mubr.bf16.gmra.mrb[0].mxu0 %v500
      %v659 = vpop.f32.mrb[0].mxu0
      %v660 = vadd.f32 0.0, %v659
      %v661 = vpop.f32.mrb[0].mxu0
      %v662 = vpop.f32.mrb[0].mxu0
      %v663 = vadd.f32 0.0, %v662
      %v664 = vpop.f32.mrb[0].mxu0
      %665 = vmatprep.mubr.bf16.mxu0 0
      %666 = vmatmul.mubr.bf16.gmra.mrb[0].mxu0 %v501
      %v667 = vpop.f32.mrb[0].mxu0
      %v668 = vadd.f32 0.0, %v667
      %v669 = vpop.f32.mrb[0].mxu0
      %v670 = vpop.f32.mrb[0].mxu0
      %v671 = vadd.f32 0.0, %v670
      %v672 = vpop.f32.mrb[0].mxu0
      %673 = vmatprep.mubr.bf16.mxu0 0
      %674 = vmatmul.mubr.bf16.gmra.mrb[0].mxu0 %v502
      %v675 = vpop.f32.mrb[0].mxu0
      %v676 = vadd.f32 0.0, %v675
      %v677 = vpop.f32.mrb[0].mxu0
      %v678 = vpop.f32.mrb[0].mxu0
      %v679 = vadd.f32 0.0, %v678
      %v680 = vpop.f32.mrb[0].mxu0
      %681 = vmatprep.mubr.bf16.mxu0 0
      %682 = vmatmul.mubr.bf16.gmra.mrb[0].mxu0 %v503
      %v683 = vpop.f32.mrb[0].mxu0
      %v684 = vadd.f32 0.0, %v683
      %v685 = vpop.f32.mrb[0].mxu0
      %v686 = vpop.f32.mrb[0].mxu0
      %v687 = vadd.f32 0.0, %v686
      %v688 = vpop.f32.mrb[0].mxu0
      %689 = vmatprep.mubr.bf16.mxu0 0
      %690 = vmatmul.mubr.bf16.gmra.mrb[0].mxu0 %v504
      %v691 = vpop.f32.mrb[0].mxu0
      %v692 = vadd.f32 0.0, %v691
      %v693 = vpop.f32.mrb[0].mxu0
      %v694 = vpop.f32.mrb[0].mxu0
      %v695 = vadd.f32 0.0, %v694
      %v696 = vpop.f32.mrb[0].mxu0
      %697 = vdwg.mxu0
      %v714 = vunpack.c.l.b16 %v505
      %v715 = vunpack.c.l.b16 %v506
      %v716 = vunpack.c.l.b16 %v507
      %v717 = vunpack.c.l.b16 %v508
      %v718 = vunpack.c.l.b16 %v509
      %v719 = vunpack.c.l.b16 %v510
      %v720 = vunpack.c.l.b16 %v511
      %v721 = vunpack.c.l.b16 %v512
      %v722 = vunpack.c.l.b16 %v513
      %v723 = vunpack.c.l.b16 %v514
      %v724 = vunpack.c.l.b16 %v515
      %v725 = vunpack.c.l.b16 %v516
      %v726 = vunpack.c.l.b16 %v517
      %v727 = vunpack.c.l.b16 %v518
      %v728 = vunpack.c.l.b16 %v519
      %v729 = vunpack.c.l.b16 %v520
      %v730 = vpack.c.b16 %v715, %v714
      %v731 = vpack.c.b16 %v717, %v716
      %v732 = vpack.c.b16 %v719, %v718
      %v733 = vpack.c.b16 %v721, %v720
      %v734 = vpack.c.b16 %v723, %v722
      %v735 = vpack.c.b16 %v725, %v724
      %v736 = vpack.c.b16 %v727, %v726
      %v737 = vpack.c.b16 %v729, %v728
      %v762 = vunpack.c.l.b16 %v521
      %v763 = vunpack.c.l.b16 %v522
      %v764 = vunpack.c.l.b16 %v523
      %v765 = vunpack.c.l.b16 %v524
      %v766 = vunpack.c.l.b16 %v525
      %v767 = vunpack.c.l.b16 %v526
      %v768 = vunpack.c.l.b16 %v527
      %v769 = vunpack.c.l.b16 %v528
      %v770 = vunpack.c.l.b16 %v529
      %v771 = vunpack.c.l.b16 %v530
      %v772 = vunpack.c.l.b16 %v531
      %v773 = vunpack.c.l.b16 %v532
      %v774 = vunpack.c.l.b16 %v533
      %v775 = vunpack.c.l.b16 %v534
      %v776 = vunpack.c.l.b16 %v535
      %v777 = vunpack.c.l.b16 %v536
      %v778 = vpack.c.b16 %v763, %v762
      %v779 = vpack.c.b16 %v765, %v764
      %v780 = vpack.c.b16 %v767, %v766
      %v781 = vpack.c.b16 %v769, %v768
      %v782 = vpack.c.b16 %v771, %v770
      %v783 = vpack.c.b16 %v773, %v772
      %v784 = vpack.c.b16 %v775, %v774
      %v785 = vpack.c.b16 %v777, %v776
      %794 = vmatprep.subr.bf16.mxu0 0
      %795 = vmatpush1.bf16.msra.mxu0 %v778
      %796 = vmatprep.subr.bf16.mxu0 0
      %797 = vmatpush1.bf16.msra.mxu0 %v779
      %798 = vmatprep.subr.bf16.mxu0 0
      %799 = vmatpush1.bf16.msra.mxu0 %v780
      %800 = vmatprep.subr.bf16.mxu0 0
      %801 = vmatpush1.bf16.msra.mxu0 %v781
      %802 = vmatprep.subr.bf16.mxu0 0
      %803 = vmatpush1.bf16.msra.mxu0 %v782
      %804 = vmatprep.subr.bf16.mxu0 0
      %805 = vmatpush1.bf16.msra.mxu0 %v783
      %806 = vmatprep.subr.bf16.mxu0 0
      %807 = vmatpush1.bf16.msra.mxu0 %v784
      %808 = vmatprep.subr.bf16.mxu0 0
      %809 = vmatpush1.bf16.msra.mxu0 %v785
      %810 = vmatprep.subr.bf16.mxu0 0
      %811 = vmatpush1.bf16.msra.mxu0 0
      %812 = vmatprep.subr.bf16.mxu0 0
      %813 = vmatpush1.bf16.msra.mxu0 0
      %814 = vmatprep.subr.bf16.mxu0 0
      %815 = vmatpush1.bf16.msra.mxu0 0
      %816 = vmatprep.subr.bf16.mxu0 0
      %817 = vmatpush1.bf16.msra.mxu0 0
      %818 = vmatprep.subr.bf16.mxu0 0
      %819 = vmatpush1.bf16.msra.mxu0 0
      %820 = vmatprep.subr.bf16.mxu0 0
      %821 = vmatpush1.bf16.msra.mxu0 0
      %822 = vmatprep.subr.bf16.mxu0 0
      %823 = vmatpush1.bf16.msra.mxu0 0
      %824 = vmatprep.subr.bf16.mxu0 0
      %825 = vmatpush1.bf16.msra.mxu0 0
      %826 = vmatprep.mubr.bf16.mxu0 0
      %827 = vmatmul.mubr.bf16.gmra.mrb[0].mxu0 %v730
      %v828 = vpop.f32.mrb[0].mxu0
      %v829 = vadd.f32 %v636, %v828
      %v830 = vpop.f32.mrb[0].mxu0
      %v831 = vpop.f32.mrb[0].mxu0
      %v832 = vadd.f32 %v639, %v831
      %v833 = vpop.f32.mrb[0].mxu0
      %834 = vmatprep.mubr.bf16.mxu0 0
      %835 = vmatmul.mubr.bf16.gmra.mrb[0].mxu0 %v731
      %v836 = vpop.f32.mrb[0].mxu0
      %v837 = vadd.f32 %v644, %v836
      %v838 = vpop.f32.mrb[0].mxu0
      %v839 = vpop.f32.mrb[0].mxu0
      %v840 = vadd.f32 %v647, %v839
      %v841 = vpop.f32.mrb[0].mxu0
      %842 = vmatprep.mubr.bf16.mxu0 0
      %843 = vmatmul.mubr.bf16.gmra.mrb[0].mxu0 %v732
      %v844 = vpop.f32.mrb[0].mxu0
      %v845 = vadd.f32 %v652, %v844
      %v846 = vpop.f32.mrb[0].mxu0
      %v847 = vpop.f32.mrb[0].mxu0
      %v848 = vadd.f32 %v655, %v847
      %v849 = vpop.f32.mrb[0].mxu0
      %850 = vmatprep.mubr.bf16.mxu0 0
      %851 = vmatmul.mubr.bf16.gmra.mrb[0].mxu0 %v733
      %v852 = vpop.f32.mrb[0].mxu0
      %v853 = vadd.f32 %v660, %v852
      %v854 = vpop.f32.mrb[0].mxu0
      %v855 = vpop.f32.mrb[0].mxu0
      %v856 = vadd.f32 %v663, %v855
      %v857 = vpop.f32.mrb[0].mxu0
      %858 = vmatprep.mubr.bf16.mxu0 0
      %859 = vmatmul.mubr.bf16.gmra.mrb[0].mxu0 %v734
      %v860 = vpop.f32.mrb[0].mxu0
      %v861 = vadd.f32 %v668, %v860
      %v862 = vpop.f32.mrb[0].mxu0
      %v863 = vpop.f32.mrb[0].mxu0
      %v864 = vadd.f32 %v671, %v863
      %v865 = vpop.f32.mrb[0].mxu0
      %866 = vmatprep.mubr.bf16.mxu0 0
      %867 = vmatmul.mubr.bf16.gmra.mrb[0].mxu0 %v735
      %v868 = vpop.f32.mrb[0].mxu0
      %v869 = vadd.f32 %v676, %v868
      %v870 = vpop.f32.mrb[0].mxu0
      %v871 = vpop.f32.mrb[0].mxu0
      %v872 = vadd.f32 %v679, %v871
      %v873 = vpop.f32.mrb[0].mxu0
      %874 = vmatprep.mubr.bf16.mxu0 0
      %875 = vmatmul.mubr.bf16.gmra.mrb[0].mxu0 %v736
      %v876 = vpop.f32.mrb[0].mxu0
      %v877 = vadd.f32 %v684, %v876
      %v878 = vpop.f32.mrb[0].mxu0
      %v879 = vpop.f32.mrb[0].mxu0
      %v880 = vadd.f32 %v687, %v879
      %v881 = vpop.f32.mrb[0].mxu0
      %882 = vmatprep.mubr.bf16.mxu0 0
      %883 = vmatmul.mubr.bf16.gmra.mrb[0].mxu0 %v737
      %v884 = vpop.f32.mrb[0].mxu0
      %v885 = vadd.f32 %v692, %v884
      %v886 = vpop.f32.mrb[0].mxu0
      %v887 = vpop.f32.mrb[0].mxu0
      %v888 = vadd.f32 %v695, %v887
      %v889 = vpop.f32.mrb[0].mxu0
      %890 = vdwg.mxu0
      %v891 = vld [vmem:[%s8] sm:$0x1]
      %v893 = vlaneseq
      %v894 = vshrl.u32 %v893, 7
      %v895 = vsub.s32 0, %v894
      %v896 = vrot.slane %v891, %v895
      %v898 = vadd.f32 %v829, %v896
      %v899 = vadd.f32 %v832, %v896
      %v900 = vadd.f32 %v837, %v896
      %v901 = vadd.f32 %v840, %v896
      %v902 = vadd.f32 %v845, %v896
      %v903 = vadd.f32 %v848, %v896
      %v904 = vadd.f32 %v853, %v896
      %v905 = vadd.f32 %v856, %v896
      %v906 = vadd.f32 %v861, %v896
      %v907 = vadd.f32 %v864, %v896
      %v908 = vadd.f32 %v869, %v896
      %v909 = vadd.f32 %v872, %v896
      %v910 = vadd.f32 %v877, %v896
      %v911 = vadd.f32 %v880, %v896
      %v912 = vadd.f32 %v885, %v896
      %v913 = vadd.f32 %v888, %v896
      %v914 = vmax.f32 %v898, 0.0
      %v915 = vmax.f32 %v899, 0.0
      %v916 = vmax.f32 %v900, 0.0
      %v917 = vmax.f32 %v901, 0.0
      %v918 = vmax.f32 %v902, 0.0
      %v919 = vmax.f32 %v903, 0.0
      %v920 = vmax.f32 %v904, 0.0
      %v921 = vmax.f32 %v905, 0.0
      %v922 = vmax.f32 %v906, 0.0
      %v923 = vmax.f32 %v907, 0.0
      %v924 = vmax.f32 %v908, 0.0
      %v925 = vmax.f32 %v909, 0.0
      %v926 = vmax.f32 %v910, 0.0
      %v927 = vmax.f32 %v911, 0.0
      %v928 = vmax.f32 %v912, 0.0
      %v929 = vmax.f32 %v913, 0.0
      %v930 = vpack.c.bf16 %v915, %v914
      %v931 = vpack.c.bf16 %v917, %v916
      %v932 = vpack.c.bf16 %v919, %v918
      %v933 = vpack.c.bf16 %v921, %v920
      %v934 = vpack.c.bf16 %v923, %v922
      %v935 = vpack.c.bf16 %v925, %v924
      %v936 = vpack.c.bf16 %v927, %v926
      %v937 = vpack.c.bf16 %v929, %v928
      %v946 = vunpack.c.l.b16 %v930
      %v947 = vunpack.c.h.b16 %v930
      %v948 = vunpack.c.l.b16 %v931
      %v949 = vunpack.c.h.b16 %v931
      %v950 = vunpack.c.l.b16 %v932
      %v951 = vunpack.c.h.b16 %v932
      %v952 = vunpack.c.l.b16 %v933
      %v953 = vunpack.c.h.b16 %v933
      %v954 = vunpack.c.l.b16 %v934
      %v955 = vunpack.c.h.b16 %v934
      %v956 = vunpack.c.l.b16 %v935
      %v957 = vunpack.c.h.b16 %v935
      %v958 = vunpack.c.l.b16 %v936
      %v959 = vunpack.c.h.b16 %v936
      %v960 = vunpack.c.l.b16 %v937
      %v961 = vunpack.c.h.b16 %v937
      %v962 = vpack.c.b16 %v946, %v946
      %v963 = vpack.c.b16 %v947, %v947
      %v964 = vpack.c.b16 %v948, %v948
      %v965 = vpack.c.b16 %v949, %v949
      %v966 = vpack.c.b16 %v950, %v950
      %v967 = vpack.c.b16 %v951, %v951
      %v968 = vpack.c.b16 %v952, %v952
      %v969 = vpack.c.b16 %v953, %v953
      %v970 = vpack.c.b16 %v954, %v954
      %v971 = vpack.c.b16 %v955, %v955
      %v972 = vpack.c.b16 %v956, %v956
      %v973 = vpack.c.b16 %v957, %v957
      %v974 = vpack.c.b16 %v958, %v958
      %v975 = vpack.c.b16 %v959, %v959
      %v976 = vpack.c.b16 %v960, %v960
      %v977 = vpack.c.b16 %v961, %v961
      %994 = vst [vmem:[#allocation12] sm:$0xf] %v962
      %995 = vst [vmem:[#allocation12 + $0x4] sm:$0xf] %v963
      %996 = vst [vmem:[#allocation12 + $0x8] sm:$0xf] %v964
      %997 = vst [vmem:[#allocation12 + $0xc] sm:$0xf] %v965
      %998 = vst [vmem:[#allocation12 + $0x10] sm:$0xf] %v966
      %999 = vst [vmem:[#allocation12 + $0x14] sm:$0xf] %v967
      %1000 = vst [vmem:[#allocation12 + $0x18] sm:$0xf] %v968
      %1001 = vst [vmem:[#allocation12 + $0x1c] sm:$0xf] %v969
      %1002 = vst [vmem:[#allocation12 + $0x20] sm:$0xf] %v970
      %1003 = vst [vmem:[#allocation12 + $0x24] sm:$0xf] %v971
      %1004 = vst [vmem:[#allocation12 + $0x28] sm:$0xf] %v972
      %1005 = vst [vmem:[#allocation12 + $0x2c] sm:$0xf] %v973
      %1006 = vst [vmem:[#allocation12 + $0x30] sm:$0xf] %v974
      %1007 = vst [vmem:[#allocation12 + $0x34] sm:$0xf] %v975
      %1008 = vst [vmem:[#allocation12 + $0x38] sm:$0xf] %v976
      %1009 = vst [vmem:[#allocation12 + $0x3c] sm:$0xf] %v977
    $region53: #{tpu_custom_call.1} parent=1 // pred_fallthru
      _
    // Predicated region
    $region54: #{tpu_custom_call.1} parent=1 // pred_check
      _
    $region55: #{tpu_custom_call.1} parent=1 // pred_check_branch
      %1011 = sbr.rel (0) target = $region57
    $region56: #{tpu_custom_call.1} parent=1 // pred_region
      %s1013 = ssub.s32 1024, 1024
      %1014 = vsyncadd [#allocation8], %s1013
      %s1015 = sshll.u32 [#allocation12], 4
      %s1016 = int_to_ptr.vmem [resolvable:$true] %s1015
      %1021 = dma.vmem_to_hbm [thread:$0]  %s1016, 1024, %s9, [#allocation8], 64, 64, 4
    $region57: #{tpu_custom_call.1} parent=1 // pred_fallthru
      _
    // Predicated region
    $region58: #{tpu_custom_call.1} parent=1 // pred_check
      _
    $region59: #{tpu_custom_call.1} parent=1 // pred_check_branch
      %1023 = sbr.rel (0) target = $region61
    $region60: #{tpu_custom_call.1} parent=1 // pred_region
      %1024 = dma.done [#allocation8], 1024
    $region61: #{tpu_custom_call.1} parent=1 // pred_fallthru
      _
    %1025 = vsyncpa [#allocation7], 1
    %1026 = vsyncpa [#allocation10], 1
    %1027 = vsyncpa [#allocation8], 1

</llo_original>
